<compile_context>
chip_gen: v6e
topology: v6e:2x2x1
jax: 0.10.0
libtpu: 0.0.40
codegen_flags: <defaults>
</compile_context>

<pallas_src>
import jax
import jax.numpy as jnp
from jax import lax
from jax.experimental import pallas as pl
from jax.experimental.pallas import tpu as pltpu

_TILE_N = 4096           # max rows per grid step (multiple of 8)
_SINGLE_BLOCK_MAX = 256  # small batches: one full-extent block, no tiling


def _round_up(v, m):
    return ((v + m - 1) // m) * m


def _iris_mlp_kernel(x_ref, w1_ref, b1_ref, w2_ref, b2_ref, w3_ref, b3_ref,
                     o_ref):
    # x_ref: (tile_n, 4)   w1: (4, 64)   b1: (1, 64)
    # w2:   (64, 64)       b2: (1, 64)
    # w3:   (64, 3)        b3: (1, 3)    o_ref: (tile_n, 3)
    x = x_ref[...]
    w1 = w1_ref[...]

    # Layer 1 on the VPU: the K=4 contraction as 4 broadcast multiply-adds.
    # (Avoids a 4-deep MXU contraction with a 4-lane operand; VALU/XLU are idle
    # in this kernel so this work is effectively free.)
    h1 = b1_ref[...] + x[:, 0:1] * w1[0:1, :]
    for k in range(1, x.shape[1]):
        h1 = h1 + x[:, k:k + 1] * w1[k:k + 1, :]
    h1 = jnp.maximum(h1, 0.0)

    # Layers 2 and 3 on the MXU with f32 accumulation.
    h2 = jnp.dot(h1, w2_ref[...], preferred_element_type=jnp.float32)
    h2 = jnp.maximum(h2 + b2_ref[...], 0.0)

    out = jnp.dot(h2, w3_ref[...], preferred_element_type=jnp.float32)
    o_ref[...] = (out + b3_ref[...]).astype(o_ref.dtype)


def iris_forward(x, params):
    """x: (N, 4) float32. params: dict of w1,b1,w2,b2,w3,b3. Returns (N, 3)."""
    w1, b1 = params["w1"], params["b1"]
    w2, b2 = params["w2"], params["b2"]
    w3, b3 = params["w3"], params["b3"]

    n, f = x.shape
    out_dim = w3.shape[1]  # 3

    if n <= _SINGLE_BLOCK_MAX:
        # Single block covering the whole batch: block dim == full array dim,
        # so no 8-row alignment / padding of x is required.
        tile_n = n
    else:
        # At least 2 grid steps so a v7x megacore gives both TensorCores work,
        # capped at _TILE_N rows per step. Pallas masks the ragged last block
        # (rows are independent, so garbage pad rows are discarded on store).
        tile_n = min(_TILE_N, _round_up(pl.cdiv(n, 2), 8))

    grid = (pl.cdiv(n, tile_n),)

    # Weights/biases: constant index_map -> stay resident in VMEM across steps.
    resident = lambda shape: pl.BlockSpec(shape, lambda i: (0, 0))

    return pl.pallas_call(
        _iris_mlp_kernel,
        out_shape=jax.ShapeDtypeStruct((n, out_dim), x.dtype),
        grid=grid,
        in_specs=[
            pl.BlockSpec((tile_n, f), lambda i: (i, 0)),
            resident(w1.shape), resident(b1.shape),
            resident(w2.shape), resident(b2.shape),
            resident(w3.shape), resident(b3.shape),
        ],
        out_specs=pl.BlockSpec((tile_n, out_dim), lambda i: (i, 0)),
        compiler_params=pltpu.CompilerParams(
            dimension_semantics=("parallel",),
            # Lane-padded (tile_n, 4)/(tile_n, 3) VMEM buffers at a 4096-row
            # tile need more than v5e's 16 MiB default scoped VMEM; well under
            # every chip's physical VMEM (64 MiB on v7x, 128 MiB on v5e/v6e).
            vmem_limit_bytes=48 * 1024 * 1024),
    )(x, w1, b1, w2, b2, w3, b3)


def init_params(key):
    """Deterministic init mimicking nn.Linear defaults (U[-1/sqrt(fan_in), +])."""
    def linear(key, fan_in, fan_out):
        kw, kb = jax.random.split(key)
        bound = 1.0 / jnp.sqrt(jnp.float32(fan_in))
        # Stored as (in, out) so the kernel computes x @ W + b directly.
        w = jax.random.uniform(kw, (fan_in, fan_out), jnp.float32,
                               minval=-bound, maxval=bound)
        b = jax.random.uniform(kb, (1, fan_out), jnp.float32,
                               minval=-bound, maxval=bound)
        return w, b

    k1, k2, k3 = jax.random.split(key, 3)
    w1, b1 = linear(k1, 4, 64)
    w2, b2 = linear(k2, 64, 64)
    w3, b3 = linear(k3, 64, 3)
    return {"w1": w1, "b1": b1, "w2": w2, "b2": b2, "w3": w3, "b3": b3}


def _reference(x, p):
    hp = lax.Precision.HIGHEST
    h1 = jnp.maximum(jnp.dot(x, p["w1"], precision=hp) + p["b1"], 0.0)
    h2 = jnp.maximum(jnp.dot(h1, p["w2"], precision=hp) + p["b2"], 0.0)
    return jnp.dot(h2, p["w3"], precision=hp) + p["b3"]


if __name__ == "__main__":
    key = jax.random.PRNGKey(0)
    kx, kx2, kx3, kp = jax.random.split(key, 4)
    params = init_params(kp)

    # Small "Iris-like" batch: 8 samples x 4 features
    # (SepalLengthCm, SepalWidthCm, PetalLengthCm, PetalWidthCm).
    x_small = jax.random.uniform(kx, (8, 4), jnp.float32, minval=0.1, maxval=8.0)
    out_small = jax.block_until_ready(iris_forward(x_small, params))
    ref_small = _reference(x_small, params)
    assert out_small.shape == (8, 3)
    assert jnp.allclose(out_small, ref_small, atol=1e-4, rtol=1e-4), \
        "small-batch mismatch vs reference"

    # Larger batch exercising the tiled / pipelined (and megacore-parallel) path.
    x_big = jax.random.uniform(kx2, (2048, 4), jnp.float32, minval=0.1, maxval=8.0)
    out_big = jax.block_until_ready(iris_forward(x_big, params))
    ref_big = _reference(x_big, params)
    assert out_big.shape == (2048, 3)
    assert jnp.allclose(out_big, ref_big, atol=1e-4, rtol=1e-4), \
        "tiled-batch mismatch vs reference"

    # Ragged batch (not a multiple of the tile): last block is masked on store.
    x_rag = jax.random.uniform(kx3, (1000, 4), jnp.float32, minval=0.1, maxval=8.0)
    out_rag = jax.block_until_ready(iris_forward(x_rag, params))
    ref_rag = _reference(x_rag, params)
    assert out_rag.shape == (1000, 3)
    assert jnp.allclose(out_rag, ref_rag, atol=1e-4, rtol=1e-4), \
        "ragged-batch mismatch vs reference"

    print("KERNEL_OK")
</pallas_src>

<mosaic_0001>
module attributes {stable_mosaic.version = 11 : i64} {
  func.func @_iris_mlp_kernel(%arg0: i32, %arg1: memref<8x4xf32, #tpu.memory_space<vmem>>, %arg2: memref<4x64xf32, #tpu.memory_space<vmem>>, %arg3: memref<1x64xf32, #tpu.memory_space<vmem>>, %arg4: memref<64x64xf32, #tpu.memory_space<vmem>>, %arg5: memref<1x64xf32, #tpu.memory_space<vmem>>, %arg6: memref<64x3xf32, #tpu.memory_space<vmem>>, %arg7: memref<1x3xf32, #tpu.memory_space<vmem>>, %arg8: memref<8x3xf32, #tpu.memory_space<vmem>>) attributes {dimension_semantics = [#tpu.dimension_semantics<parallel>], iteration_bounds = array<i64: 1>, scalar_prefetch = 0 : i64, scratch_operands = 0 : i64, tpu.core_type = #tpu.core_type<tc>, window_params = [{transform_indices = @transform_0, window_bounds = array<i64: 8, 4>}, {pipeline_mode = #tpu.pipeline_mode<synchronous>, transform_indices = @transform_1, window_bounds = array<i64: 4, 64>}, {pipeline_mode = #tpu.pipeline_mode<synchronous>, transform_indices = @transform_2, window_bounds = array<i64: 1, 64>}, {pipeline_mode = #tpu.pipeline_mode<synchronous>, transform_indices = @transform_3, window_bounds = array<i64: 64, 64>}, {pipeline_mode = #tpu.pipeline_mode<synchronous>, transform_indices = @transform_4, window_bounds = array<i64: 1, 64>}, {pipeline_mode = #tpu.pipeline_mode<synchronous>, transform_indices = @transform_5, window_bounds = array<i64: 64, 3>}, {pipeline_mode = #tpu.pipeline_mode<synchronous>, transform_indices = @transform_6, window_bounds = array<i64: 1, 3>}, {transform_indices = @transform_7, window_bounds = array<i64: 8, 3>}]} {
    %c0 = arith.constant 0 : index
    %c0_0 = arith.constant 0 : index
    %0 = vector.load %arg1[%c0, %c0_0] : memref<8x4xf32, #tpu.memory_space<vmem>>, vector<8x4xf32>
    %c0_1 = arith.constant 0 : index
    %c0_2 = arith.constant 0 : index
    %1 = vector.load %arg2[%c0_1, %c0_2] : memref<4x64xf32, #tpu.memory_space<vmem>>, vector<4x64xf32>
    %c0_3 = arith.constant 0 : index
    %c0_4 = arith.constant 0 : index
    %2 = vector.load %arg3[%c0_3, %c0_4] : memref<1x64xf32, #tpu.memory_space<vmem>>, vector<1x64xf32>
    %3 = vector.extract_strided_slice %0 {offsets = [0, 0], sizes = [8, 1], strides = [1, 1]} : vector<8x4xf32> to vector<8x1xf32>
    %4 = vector.extract_strided_slice %1 {offsets = [0, 0], sizes = [1, 64], strides = [1, 1]} : vector<4x64xf32> to vector<1x64xf32>
    %5 = vector.broadcast %3 : vector<8x1xf32> to vector<8x64xf32>
    %6 = vector.broadcast %4 : vector<1x64xf32> to vector<8x64xf32>
    %7 = arith.mulf %5, %6 : vector<8x64xf32>
    %8 = vector.broadcast %2 : vector<1x64xf32> to vector<8x64xf32>
    %9 = arith.addf %8, %7 : vector<8x64xf32>
    %10 = vector.extract_strided_slice %0 {offsets = [0, 1], sizes = [8, 1], strides = [1, 1]} : vector<8x4xf32> to vector<8x1xf32>
    %11 = vector.extract_strided_slice %1 {offsets = [1, 0], sizes = [1, 64], strides = [1, 1]} : vector<4x64xf32> to vector<1x64xf32>
    %12 = vector.broadcast %10 : vector<8x1xf32> to vector<8x64xf32>
    %13 = vector.broadcast %11 : vector<1x64xf32> to vector<8x64xf32>
    %14 = arith.mulf %12, %13 : vector<8x64xf32>
    %15 = arith.addf %9, %14 : vector<8x64xf32>
    %16 = vector.extract_strided_slice %0 {offsets = [0, 2], sizes = [8, 1], strides = [1, 1]} : vector<8x4xf32> to vector<8x1xf32>
    %17 = vector.extract_strided_slice %1 {offsets = [2, 0], sizes = [1, 64], strides = [1, 1]} : vector<4x64xf32> to vector<1x64xf32>
    %18 = vector.broadcast %16 : vector<8x1xf32> to vector<8x64xf32>
    %19 = vector.broadcast %17 : vector<1x64xf32> to vector<8x64xf32>
    %20 = arith.mulf %18, %19 : vector<8x64xf32>
    %21 = arith.addf %15, %20 : vector<8x64xf32>
    %22 = vector.extract_strided_slice %0 {offsets = [0, 3], sizes = [8, 1], strides = [1, 1]} : vector<8x4xf32> to vector<8x1xf32>
    %23 = vector.extract_strided_slice %1 {offsets = [3, 0], sizes = [1, 64], strides = [1, 1]} : vector<4x64xf32> to vector<1x64xf32>
    %24 = vector.broadcast %22 : vector<8x1xf32> to vector<8x64xf32>
    %25 = vector.broadcast %23 : vector<1x64xf32> to vector<8x64xf32>
    %26 = arith.mulf %24, %25 : vector<8x64xf32>
    %27 = arith.addf %21, %26 : vector<8x64xf32>
    %cst = arith.constant 0.000000e+00 : f32
    %28 = vector.broadcast %cst : f32 to vector<8x64xf32>
    %29 = arith.maximumf %27, %28 : vector<8x64xf32>
    %c0_5 = arith.constant 0 : index
    %c0_6 = arith.constant 0 : index
    %30 = vector.load %arg4[%c0_5, %c0_6] : memref<64x64xf32, #tpu.memory_space<vmem>>, vector<64x64xf32>
    %cst_7 = arith.constant dense<0.000000e+00> : vector<8x64xf32>
    %31 = tpu.matmul %29, %30, %cst_7 {dimension_numbers = #tpu.dot_dimension_numbers<[1], [0], [0], [1], [0, 0, 1, 1], [], []>} : vector<8x64xf32>, vector<64x64xf32>, vector<8x64xf32> -> vector<8x64xf32>
    %c0_8 = arith.constant 0 : index
    %c0_9 = arith.constant 0 : index
    %32 = vector.load %arg5[%c0_8, %c0_9] : memref<1x64xf32, #tpu.memory_space<vmem>>, vector<1x64xf32>
    %33 = vector.broadcast %32 : vector<1x64xf32> to vector<8x64xf32>
    %34 = arith.addf %31, %33 : vector<8x64xf32>
    %cst_10 = arith.constant 0.000000e+00 : f32
    %35 = vector.broadcast %cst_10 : f32 to vector<8x64xf32>
    %36 = arith.maximumf %34, %35 : vector<8x64xf32>
    %c0_11 = arith.constant 0 : index
    %c0_12 = arith.constant 0 : index
    %37 = vector.load %arg6[%c0_11, %c0_12] : memref<64x3xf32, #tpu.memory_space<vmem>>, vector<64x3xf32>
    %cst_13 = arith.constant dense<0.000000e+00> : vector<8x3xf32>
    %38 = tpu.matmul %36, %37, %cst_13 {dimension_numbers = #tpu.dot_dimension_numbers<[1], [0], [0], [1], [0, 0, 1, 1], [], []>} : vector<8x64xf32>, vector<64x3xf32>, vector<8x3xf32> -> vector<8x3xf32>
    %c0_14 = arith.constant 0 : index
    %c0_15 = arith.constant 0 : index
    %39 = vector.load %arg7[%c0_14, %c0_15] : memref<1x3xf32, #tpu.memory_space<vmem>>, vector<1x3xf32>
    %40 = vector.broadcast %39 : vector<1x3xf32> to vector<8x3xf32>
    %41 = arith.addf %38, %40 : vector<8x3xf32>
    %c0_16 = arith.constant 0 : index
    %c0_17 = arith.constant 0 : index
    %42 = vector.load %arg8[%c0_16, %c0_17] : memref<8x3xf32, #tpu.memory_space<vmem>>, vector<8x3xf32>
    tpu.vector_store %arg8[%c0_16, %c0_17], %41 {strides = array<i32>} : memref<8x3xf32, #tpu.memory_space<vmem>>, vector<8x3xf32>,
    return
  }
  func.func @transform_0(%arg0: i32) -> (i32, i32) {
    %c0_i32 = arith.constant 0 : i32
    %c0_i32_0 = arith.constant 0 : i32
    return %arg0, %c0_i32 : i32, i32
  }
  func.func @transform_1(%arg0: i32) -> (i32, i32) {
    %c0_i32 = arith.constant 0 : i32
    %c0_i32_0 = arith.constant 0 : i32
    %c0_i32_1 = arith.constant 0 : i32
    return %c0_i32, %c0_i32_0 : i32, i32
  }
  func.func @transform_2(%arg0: i32) -> (i32, i32) {
    %c0_i32 = arith.constant 0 : i32
    %c0_i32_0 = arith.constant 0 : i32
    %c0_i32_1 = arith.constant 0 : i32
    return %c0_i32, %c0_i32_0 : i32, i32
  }
  func.func @transform_3(%arg0: i32) -> (i32, i32) {
    %c0_i32 = arith.constant 0 : i32
    %c0_i32_0 = arith.constant 0 : i32
    %c0_i32_1 = arith.constant 0 : i32
    return %c0_i32, %c0_i32_0 : i32, i32
  }
  func.func @transform_4(%arg0: i32) -> (i32, i32) {
    %c0_i32 = arith.constant 0 : i32
    %c0_i32_0 = arith.constant 0 : i32
    %c0_i32_1 = arith.constant 0 : i32
    return %c0_i32, %c0_i32_0 : i32, i32
  }
  func.func @transform_5(%arg0: i32) -> (i32, i32) {
    %c0_i32 = arith.constant 0 : i32
    %c0_i32_0 = arith.constant 0 : i32
    %c0_i32_1 = arith.constant 0 : i32
    return %c0_i32, %c0_i32_0 : i32, i32
  }
  func.func @transform_6(%arg0: i32) -> (i32, i32) {
    %c0_i32 = arith.constant 0 : i32
    %c0_i32_0 = arith.constant 0 : i32
    %c0_i32_1 = arith.constant 0 : i32
    return %c0_i32, %c0_i32_0 : i32, i32
  }
  func.func @transform_7(%arg0: i32) -> (i32, i32) {
    %c0_i32 = arith.constant 0 : i32
    %c0_i32_0 = arith.constant 0 : i32
    return %arg0, %c0_i32 : i32, i32
  }
}

</mosaic_0001>

<llo_original>
// kernel: tpu_custom_call.1
$region0: #{tpu_custom_call.1}
  #allocation0 [shape = 'u32[]', space=smem, size = 0x4, offset = 0x4, fixed_abs, tag = 'smem constant byte address 0x4 - core index']
  #allocation1 [shape = 'u32[144,128]{1,0:T(1,128)}', space=vmem, size = 0x12000, scoped, tag = 'internal scratch']
  %s0 = inlined_call_operand.vmem [shape: f32[8,4], index: 0, kind: input, shape index: {}]
  %s1 = inlined_call_operand.vmem [shape: f32[4,64], index: 1, kind: input, shape index: {}]
  %s2 = inlined_call_operand.vmem [shape: f32[1,64], index: 2, kind: input, shape index: {}]
  %s3 = inlined_call_operand.vmem [shape: f32[64,64], index: 3, kind: input, shape index: {}]
  %s4 = inlined_call_operand.vmem [shape: f32[1,64], index: 4, kind: input, shape index: {}]
  %s5 = inlined_call_operand.vmem [shape: f32[64,3], index: 5, kind: input, shape index: {}]
  %s6 = inlined_call_operand.vmem [shape: f32[1,3], index: 6, kind: input, shape index: {}]
  %s7 = inlined_call_operand.vmem [shape: f32[8,3], index: 7, kind: output, shape index: {}]
  %s8 = sld [smem:[#allocation0]]
  $region38: #{tpu_custom_call.1} parent=0
    _
  %s10 = ssub.s32 1, %s8
  %s11 = scalar_select 0, %s10, %s8
  // Predicated region
  $region2: #{tpu_custom_call.1} parent=0 // pred_check
    _
  $region3: #{tpu_custom_call.1} parent=0 // pred_check_branch
    %13 = sbr.rel (0) target = $region5
  $region4: #{tpu_custom_call.1} parent=0 // pred_region
    _
  $region5: #{tpu_custom_call.1} parent=0 // pred_fallthru
    _
  // Predicated region
  $region6: #{tpu_custom_call.1} parent=0 // pred_check
    _
  $region7: #{tpu_custom_call.1} parent=0 // pred_check_branch
    %15 = sbr.rel (0) target = $region9
  $region8: #{tpu_custom_call.1} parent=0 // pred_region
    _
  $region9: #{tpu_custom_call.1} parent=0 // pred_fallthru
    _
  // Predicated region
  $region10: #{tpu_custom_call.1} parent=0 // pred_check
    _
  $region11: #{tpu_custom_call.1} parent=0 // pred_check_branch
    %17 = sbr.rel (0) target = $region13
  $region12: #{tpu_custom_call.1} parent=0 // pred_region
    _
  $region13: #{tpu_custom_call.1} parent=0 // pred_fallthru
    _
  // Predicated region
  $region14: #{tpu_custom_call.1} parent=0 // pred_check
    _
  $region15: #{tpu_custom_call.1} parent=0 // pred_check_branch
    %19 = sbr.rel (0) target = $region17
  $region16: #{tpu_custom_call.1} parent=0 // pred_region
    _
  $region17: #{tpu_custom_call.1} parent=0 // pred_fallthru
    _
  // Predicated region
  $region18: #{tpu_custom_call.1} parent=0 // pred_check
    _
  $region19: #{tpu_custom_call.1} parent=0 // pred_check_branch
    %21 = sbr.rel (0) target = $region21
  $region20: #{tpu_custom_call.1} parent=0 // pred_region
    _
  $region21: #{tpu_custom_call.1} parent=0 // pred_fallthru
    _
  // Predicated region
  $region22: #{tpu_custom_call.1} parent=0 // pred_check
    _
  $region23: #{tpu_custom_call.1} parent=0 // pred_check_branch
    %23 = sbr.rel (0) target = $region25
  $region24: #{tpu_custom_call.1} parent=0 // pred_region
    _
  $region25: #{tpu_custom_call.1} parent=0 // pred_fallthru
    _
  // Predicated region
  $region26: #{tpu_custom_call.1} parent=0 // pred_check
    _
  $region27: #{tpu_custom_call.1} parent=0 // pred_check_branch
    %25 = sbr.rel (0) target = $region29
  $region28: #{tpu_custom_call.1} parent=0 // pred_region
    _
  $region29: #{tpu_custom_call.1} parent=0 // pred_fallthru
    _
  %v26 = vld [vmem:[%s0] sm:$0xff]
  %v27 = vld [vmem:[%s1] sm:$0xf]
  %v28 = vld [vmem:[%s2] sm:$0x1]
  %30 = vset.pattern.permute.xlu0 0
  %31 = vperm.xlu0 %30, %v26
  %v32 = vpop.permute.xlu0 %31
  %v34 = vlaneseq
  %v35 = vshrl.u32 %v34, 7
  %v36 = vsub.s32 0, %v35
  %v37 = vrot.slane %v27, %v36
  %v38 = vmul.f32 %v32, %v37
  %v40 = vlaneseq
  %v41 = vshrl.u32 %v40, 7
  %v42 = vsub.s32 0, %v41
  %v43 = vrot.slane %v28, %v42
  %v45 = vadd.f32 %v43, %v38
  %46 = vset.pattern.permute.xlu0 1
  %47 = vperm.xlu0 %46, %v26
  %v48 = vpop.permute.xlu0 %47
  %v50 = vlaneseq
  %v51 = vshrl.u32 %v50, 7
  %v52 = vsub.s32 1, %v51
  %v53 = vrot.slane %v27, %v52
  %v54 = vmul.f32 %v48, %v53
  %v55 = vadd.f32 %v45, %v54
  %56 = vset.pattern.permute.xlu0 2
  %57 = vperm.xlu0 %56, %v26
  %v58 = vpop.permute.xlu0 %57
  %v60 = vlaneseq
  %v61 = vshrl.u32 %v60, 7
  %v62 = vsub.s32 2, %v61
  %v63 = vrot.slane %v27, %v62
  %v64 = vmul.f32 %v58, %v63
  %v65 = vadd.f32 %v55, %v64
  %66 = vset.pattern.permute.xlu0 3
  %67 = vperm.xlu0 %66, %v26
  %v68 = vpop.permute.xlu0 %67
  %v70 = vlaneseq
  %v71 = vshrl.u32 %v70, 7
  %v72 = vsub.s32 3, %v71
  %v73 = vrot.slane %v27, %v72
  %v74 = vmul.f32 %v68, %v73
  %v75 = vadd.f32 %v65, %v74
  %v76 = vmax.f32 %v75, 0.0
  %v77 = vld [vmem:[%s3] sm:$0xff]
  %v78 = vld [vmem:[%s3 + $0x8] sm:$0xff]
  %v79 = vld [vmem:[%s3 + $0x10] sm:$0xff]
  %v80 = vld [vmem:[%s3 + $0x18] sm:$0xff]
  %v81 = vld [vmem:[%s3 + $0x20] sm:$0xff]
  %v82 = vld [vmem:[%s3 + $0x28] sm:$0xff]
  %v83 = vld [vmem:[%s3 + $0x30] sm:$0xff]
  %v84 = vld [vmem:[%s3 + $0x38] sm:$0xff]
  %v85 = vld [vmem:[%s4] sm:$0x1]
  %v87 = vlaneseq
  %v88 = vshrl.u32 %v87, 7
  %v89 = vsub.s32 0, %v88
  %v90 = vrot.slane %v85, %v89
  %vm92 = vcmask 523264
  %v94 = vsel %vm92, %v76, 0
  %96 = vmatprep.subr.mxu0 0.0
  %97 = vmatpush1.msra.mxu0 0.0
  %98 = vmatprep.subr.mxu0 0.0
  %99 = vmatpush1.msra.mxu0 0.0
  %100 = vmatprep.subr.mxu0 0.0
  %101 = vmatpush1.msra.mxu0 0.0
  %102 = vmatprep.subr.mxu0 0.0
  %103 = vmatpush1.msra.mxu0 0.0
  %104 = vmatprep.subr.mxu0 0.0
  %105 = vmatpush1.msra.mxu0 0.0
  %106 = vmatprep.subr.mxu0 0.0
  %107 = vmatpush1.msra.mxu0 0.0
  %108 = vmatprep.subr.mxu0 0.0
  %109 = vmatpush1.msra.mxu0 0.0
  %110 = vmatprep.subr.mxu0 0.0
  %111 = vmatpush1.msra.mxu0 0.0
  %112 = vmatprep.subr.mxu0 0.0
  %113 = vmatpush1.msra.mxu0 %v84
  %114 = vmatprep.subr.mxu0 0.0
  %115 = vmatpush1.msra.mxu0 %v83
  %116 = vmatprep.subr.mxu0 0.0
  %117 = vmatpush1.msra.mxu0 %v82
  %118 = vmatprep.subr.mxu0 0.0
  %119 = vmatpush1.msra.mxu0 %v81
  %120 = vmatprep.subr.mxu0 0.0
  %121 = vmatpush1.msra.mxu0 %v80
  %122 = vmatprep.subr.mxu0 0.0
  %123 = vmatpush1.msra.mxu0 %v79
  %124 = vmatprep.subr.mxu0 0.0
  %125 = vmatpush1.msra.mxu0 %v78
  %126 = vmatprep.subr.mxu0 0.0
  %127 = vmatpush1.msra.mxu0 %v77
  %128 = vmatprep.subr.mxu0 0.0
  %129 = vmatpush2.msra.mxu0 0.0
  %130 = vmatprep.subr.mxu0 0.0
  %131 = vmatpush2.msra.mxu0 0.0
  %132 = vmatprep.subr.mxu0 0.0
  %133 = vmatpush2.msra.mxu0 0.0
  %134 = vmatprep.subr.mxu0 0.0
  %135 = vmatpush2.msra.mxu0 0.0
  %136 = vmatprep.subr.mxu0 0.0
  %137 = vmatpush2.msra.mxu0 0.0
  %138 = vmatprep.subr.mxu0 0.0
  %139 = vmatpush2.msra.mxu0 0.0
  %140 = vmatprep.subr.mxu0 0.0
  %141 = vmatpush2.msra.mxu0 0.0
  %142 = vmatprep.subr.mxu0 0.0
  %143 = vmatpush2.msra.mxu0 0.0
  %144 = vmatprep.subr.mxu0 0.0
  %145 = vmatpush2.msra.mxu0 0.0
  %146 = vmatprep.subr.mxu0 0.0
  %147 = vmatpush2.msra.mxu0 0.0
  %148 = vmatprep.subr.mxu0 0.0
  %149 = vmatpush2.msra.mxu0 0.0
  %150 = vmatprep.subr.mxu0 0.0
  %151 = vmatpush2.msra.mxu0 0.0
  %152 = vmatprep.subr.mxu0 0.0
  %153 = vmatpush2.msra.mxu0 0.0
  %154 = vmatprep.subr.mxu0 0.0
  %155 = vmatpush2.msra.mxu0 0.0
  %156 = vmatprep.subr.mxu0 0.0
  %157 = vmatpush2.msra.mxu0 0.0
  %158 = vmatprep.subr.mxu0 0.0
  %159 = vmatpush2.msra.mxu0 0.0
  %160 = vmatprep.mubr.f32.mxu0 0.0
  %161 = vmatmul.mubr.f32.gmra.mxu0 %v94
  %v162 = vpop.f32.mrf.mxu0
  %v163 = vadd.f32 %v90, %v162
  %v164 = vpop.f32.mrf.mxu0
  %165 = vdwg.mxu0
  %v166 = vmax.f32 %v163, 0.0
  %v167 = vld [vmem:[%s5] sm:$0xff]
  %v168 = vld [vmem:[%s5 + $0x8] sm:$0xff]
  %v169 = vld [vmem:[%s5 + $0x10] sm:$0xff]
  %v170 = vld [vmem:[%s5 + $0x18] sm:$0xff]
  %v171 = vld [vmem:[%s5 + $0x20] sm:$0xff]
  %v172 = vld [vmem:[%s5 + $0x28] sm:$0xff]
  %v173 = vld [vmem:[%s5 + $0x30] sm:$0xff]
  %v174 = vld [vmem:[%s5 + $0x38] sm:$0xff]
  %v175 = vld [vmem:[%s6] sm:$0x1]
  %v177 = vlaneseq
  %v178 = vshrl.u32 %v177, 7
  %v179 = vsub.s32 0, %v178
  %v180 = vrot.slane %v175, %v179
  %v183 = vsel %vm92, %v166, 0
  %185 = vmatprep.subr.mxu0 0.0
  %186 = vmatpush1.msra.mxu0 0.0
  %187 = vmatprep.subr.mxu0 0.0
  %188 = vmatpush1.msra.mxu0 0.0
  %189 = vmatprep.subr.mxu0 0.0
  %190 = vmatpush1.msra.mxu0 0.0
  %191 = vmatprep.subr.mxu0 0.0
  %192 = vmatpush1.msra.mxu0 0.0
  %193 = vmatprep.subr.mxu0 0.0
  %194 = vmatpush1.msra.mxu0 0.0
  %195 = vmatprep.subr.mxu0 0.0
  %196 = vmatpush1.msra.mxu0 0.0
  %197 = vmatprep.subr.mxu0 0.0
  %198 = vmatpush1.msra.mxu0 0.0
  %199 = vmatprep.subr.mxu0 0.0
  %200 = vmatpush1.msra.mxu0 0.0
  %201 = vmatprep.subr.mxu0 0.0
  %202 = vmatpush1.msra.mxu0 %v174
  %203 = vmatprep.subr.mxu0 0.0
  %204 = vmatpush1.msra.mxu0 %v173
  %205 = vmatprep.subr.mxu0 0.0
  %206 = vmatpush1.msra.mxu0 %v172
  %207 = vmatprep.subr.mxu0 0.0
  %208 = vmatpush1.msra.mxu0 %v171
  %209 = vmatprep.subr.mxu0 0.0
  %210 = vmatpush1.msra.mxu0 %v170
  %211 = vmatprep.subr.mxu0 0.0
  %212 = vmatpush1.msra.mxu0 %v169
  %213 = vmatprep.subr.mxu0 0.0
  %214 = vmatpush1.msra.mxu0 %v168
  %215 = vmatprep.subr.mxu0 0.0
  %216 = vmatpush1.msra.mxu0 %v167
  %217 = vmatprep.subr.mxu0 0.0
  %218 = vmatpush2.msra.mxu0 0.0
  %219 = vmatprep.subr.mxu0 0.0
  %220 = vmatpush2.msra.mxu0 0.0
  %221 = vmatprep.subr.mxu0 0.0
  %222 = vmatpush2.msra.mxu0 0.0
  %223 = vmatprep.subr.mxu0 0.0
  %224 = vmatpush2.msra.mxu0 0.0
  %225 = vmatprep.subr.mxu0 0.0
  %226 = vmatpush2.msra.mxu0 0.0
  %227 = vmatprep.subr.mxu0 0.0
  %228 = vmatpush2.msra.mxu0 0.0
  %229 = vmatprep.subr.mxu0 0.0
  %230 = vmatpush2.msra.mxu0 0.0
  %231 = vmatprep.subr.mxu0 0.0
  %232 = vmatpush2.msra.mxu0 0.0
  %233 = vmatprep.subr.mxu0 0.0
  %234 = vmatpush2.msra.mxu0 0.0
  %235 = vmatprep.subr.mxu0 0.0
  %236 = vmatpush2.msra.mxu0 0.0
  %237 = vmatprep.subr.mxu0 0.0
  %238 = vmatpush2.msra.mxu0 0.0
  %239 = vmatprep.subr.mxu0 0.0
  %240 = vmatpush2.msra.mxu0 0.0
  %241 = vmatprep.subr.mxu0 0.0
  %242 = vmatpush2.msra.mxu0 0.0
  %243 = vmatprep.subr.mxu0 0.0
  %244 = vmatpush2.msra.mxu0 0.0
  %245 = vmatprep.subr.mxu0 0.0
  %246 = vmatpush2.msra.mxu0 0.0
  %247 = vmatprep.subr.mxu0 0.0
  %248 = vmatpush2.msra.mxu0 0.0
  %249 = vmatprep.mubr.f32.mxu0 0.0
  %250 = vmatmul.mubr.f32.gmra.mxu0 %v183
  %v251 = vpop.f32.mrf.mxu0
  %v252 = vadd.f32 %v180, %v251
  %v253 = vpop.f32.mrf.mxu0
  %254 = vdwg.mxu0
  %vm255 = vcmask 23552
  %256 = vst.msk [vmem:[%s7] sm:$0xff] %vm255, %v252
  // Predicated region
  $region30: #{tpu_custom_call.1} parent=0 // pred_check
    _
  $region31: #{tpu_custom_call.1} parent=0 // pred_check_branch
    %258 = sbr.rel (0) target = $region33
  $region32: #{tpu_custom_call.1} parent=0 // pred_region
    _
  $region33: #{tpu_custom_call.1} parent=0 // pred_fallthru
    _
  // Predicated region
  $region34: #{tpu_custom_call.1} parent=0 // pred_check
    _
  $region35: #{tpu_custom_call.1} parent=0 // pred_check_branch
    %260 = sbr.rel (0) target = $region37
  $region36: #{tpu_custom_call.1} parent=0 // pred_region
    _
  $region37: #{tpu_custom_call.1} parent=0 // pred_fallthru
    _

</llo_original>
